<compile_context>
chip_gen: v5e
topology: v5e:2x2
jax: 0.10.0
libtpu: 0.0.40
codegen_flags: <defaults>
</compile_context>

<pallas_src>
import functools

import jax
import jax.numpy as jnp
from jax.experimental import pallas as pl
from jax.experimental.pallas import tpu as pltpu

# Scaled-down shapes consistent with the module (768 -> 32 embedding/hidden,
# feature_num kept at 287).
B = 2      # batch
T = 8      # sequence length
E = 32     # embedding dim (stand-in for 768)
H = 32     # LSTM hidden dim (hdim)
F = 287    # conv output channels (feature_num)

PARAM_NAMES = (
    "wxi", "wxf", "wxg", "wxo",     # input->gate weights, (E, H)
    "whi", "whf", "whg", "who",     # hidden->gate weights, (H, H)
    "bi", "bf", "bg", "bo",         # gate biases (b_ih + b_hh combined), (1, H)
    "wm1", "w0", "wp1",             # conv taps k=-1,0,+1 as (H, F) matrices
    "bc",                           # conv bias, (1, F)
)


def _kernel(emb_ref, wp_ref, cp_ref, out_ref, lstm_s, *,
            t_len, bp, e_dim, h_dim):
    """emb_ref: (T*Bp, E) time-major rows.  out_ref: (T*Bp, Fpad)."""
    g4 = 4 * h_dim

    # Packed LSTM params: rows [0:E]=wx, [E:E+H]=wh, then bias, scale, offs.
    # wx/wh/bias already carry the 0.5 sigmoid input pre-scale on i/f/o lanes.
    wx = wp_ref[0:e_dim, :]                                        # (E, 4H)
    wh = wp_ref[e_dim:e_dim + h_dim, :]                            # (H, 4H)
    b = wp_ref[e_dim + h_dim:e_dim + h_dim + 1, :]                 # (1, 4H)
    scale = jnp.broadcast_to(
        wp_ref[e_dim + h_dim + 1:e_dim + h_dim + 2, :], (bp, g4))  # hoisted
    offs = jnp.broadcast_to(
        wp_ref[e_dim + h_dim + 2:e_dim + h_dim + 3, :], (bp, g4))  # hoisted

    # ---- Hoisted input projection: one (T*Bp, E) @ (E, 4H) matmul + bias. --
    xp = (jnp.dot(emb_ref[...], wx, preferred_element_type=jnp.float32)
          + b)                                                     # (T*Bp, 4H)

    # Zero only the conv pad row-blocks (t = -1 and t = T); the loop fills the
    # rest of the scratch.
    lstm_s[0:bp, :] = jnp.zeros((bp, h_dim), jnp.float32)
    lstm_s[(t_len + 1) * bp:(t_len + 2) * bp, :] = jnp.zeros(
        (bp, h_dim), jnp.float32)

    # LSTM initial state: zeros (PyTorch default when h0/c0 not provided).
    h = jnp.zeros((bp, h_dim), jnp.float32)
    c = jnp.zeros((bp, h_dim), jnp.float32)

    # ---- Recurrence: fully unrolled, one (Bp,H)x(H,4H) matmul + one tanh. --
    for t in range(t_len):
        z = xp[t * bp:(t + 1) * bp, :] + jnp.dot(
            h, wh, preferred_element_type=jnp.float32)             # (Bp, 4H)
        # sigmoid(x) = 0.5*tanh(0.5*x)+0.5 for i/f/o lanes (0.5 pre-folded
        # into wx/wh/b); tanh(x) for g lanes.
        gates = jnp.tanh(z) * scale + offs
        i_g = gates[:, 0:h_dim]
        f_g = gates[:, h_dim:2 * h_dim]
        g_g = gates[:, 2 * h_dim:3 * h_dim]
        o_g = gates[:, 3 * h_dim:4 * h_dim]
        c = f_g * c + i_g * g_g
        h = o_g * jnp.tanh(c)
        lstm_s[(t + 1) * bp:(t + 2) * bp, :] = h                   # 8-row aligned

    # ---- Conv1d(H->F, k=3, pad=1) + ReLU: ONE fused K=3H matmul. -----------
    prev = lstm_s[0:t_len * bp, :]                 # h[t-1] (zeros at t=0)
    cur = lstm_s[bp:(t_len + 1) * bp, :]           # h[t]
    nxt = lstm_s[2 * bp:(t_len + 2) * bp, :]       # h[t+1] (zeros at t=T-1)
    slab = jnp.concatenate([prev, cur, nxt], axis=1)               # (T*Bp, 3H)

    wc = cp_ref[0:3 * h_dim, :]                                    # (3H, Fpad)
    bc = cp_ref[3 * h_dim:3 * h_dim + 1, :]                        # (1, Fpad)
    acc = (jnp.dot(slab, wc, preferred_element_type=jnp.float32)
           + bc)                                                   # lane dense
    out_ref[...] = jnp.maximum(acc, 0.0)


def _pack_params(p):
    """Collapse 16 small tensors into 2 packed, lane-friendly arrays."""
    h_dim = p["whi"].shape[0]
    wx = jnp.concatenate([p["wxi"], p["wxf"], p["wxg"], p["wxo"]], axis=1)  # (E,4H)
    wh = jnp.concatenate([p["whi"], p["whf"], p["whg"], p["who"]], axis=1)  # (H,4H)
    bg = jnp.concatenate([p["bi"], p["bf"], p["bg"], p["bo"]], axis=1)      # (1,4H)

    one = jnp.ones((1, h_dim), jnp.float32)
    # Input pre-scale == output scale for sigmoid-via-tanh; exact powers of 2.
    scale = jnp.concatenate([0.5 * one, 0.5 * one, one, 0.5 * one], axis=1)  # (1,4H)
    offs = jnp.concatenate([0.5 * one, 0.5 * one, 0.0 * one, 0.5 * one], axis=1)

    lstm_pack = jnp.concatenate(
        [wx * scale, wh * scale, bg * scale, scale, offs], axis=0)  # (E+H+3, 4H)

    f_dim = p["wm1"].shape[1]
    f_pad = int(pl.cdiv(f_dim, 128)) * 128
    conv_pack = jnp.concatenate(
        [p["wm1"], p["w0"], p["wp1"], p["bc"]], axis=0)             # (3H+1, F)
    conv_pack = jnp.pad(conv_pack, ((0, 0), (0, f_pad - f_dim)))    # (3H+1, Fpad)
    return lstm_pack, conv_pack, f_dim, f_pad


@jax.jit
def bert_lstm_cnn_forward(embeds_bte, params):
    """embeds_bte: (B, T, E) BERT-output embeddings. Returns (B, T, F)."""
    b, t_len, e = embeds_bte.shape
    h_dim = params["whi"].shape[0]
    bp = int(pl.cdiv(b, 8)) * 8        # pad batch rows to 8 sublanes
    lstm_pack, conv_pack, f_dim, f_pad = _pack_params(params)

    # Time-major, batch padded to Bp, flattened so row = t*Bp + b and every
    # per-step slice starts on an 8-sublane boundary.
    emb_tbe = jnp.transpose(embeds_bte, (1, 0, 2)).astype(jnp.float32)
    emb_tbe = jnp.pad(emb_tbe, ((0, 0), (0, bp - b), (0, 0)))
    emb_2d = emb_tbe.reshape(t_len * bp, e)

    vmem = pl.BlockSpec(memory_space=pltpu.MemorySpace.VMEM)
    kernel = functools.partial(_kernel, t_len=t_len, bp=bp, e_dim=e, h_dim=h_dim)

    out_2d = pl.pallas_call(
        kernel,
        out_shape=jax.ShapeDtypeStruct((t_len * bp, f_pad), jnp.float32),
        in_specs=[vmem, vmem, vmem],
        out_specs=vmem,
        scratch_shapes=[
            pltpu.VMEM(((t_len + 2) * bp, h_dim), jnp.float32),  # padded lstm out
        ],
    )(emb_2d, lstm_pack, conv_pack)

    out = out_2d.reshape(t_len, bp, f_pad)
    return jnp.transpose(out, (1, 0, 2))[:b, :, :f_dim]            # (B, T, F)


def ref_forward(embeds_bte, p):
    """Pure-JAX reference of LSTM + Conv1d(k=3, pad=1) + ReLU."""
    b, t_len, _ = embeds_bte.shape
    h_dim = p["wxi"].shape[1]
    emb_tbe = jnp.transpose(embeds_bte, (1, 0, 2)).astype(jnp.float32)

    def step(carry, x):
        h, c = carry
        i = jax.nn.sigmoid(x @ p["wxi"] + h @ p["whi"] + p["bi"])
        f = jax.nn.sigmoid(x @ p["wxf"] + h @ p["whf"] + p["bf"])
        g = jnp.tanh(x @ p["wxg"] + h @ p["whg"] + p["bg"])
        o = jax.nn.sigmoid(x @ p["wxo"] + h @ p["who"] + p["bo"])
        c = f * c + i * g
        h = o * jnp.tanh(c)
        return (h, c), h

    init = (jnp.zeros((b, h_dim), jnp.float32), jnp.zeros((b, h_dim), jnp.float32))
    _, hs = jax.lax.scan(step, init, emb_tbe)             # (T, B, H)
    lstm_bth = jnp.transpose(hs, (1, 0, 2))               # (B, T, H)

    prev = jnp.pad(lstm_bth, ((0, 0), (1, 0), (0, 0)))[:, :t_len, :]
    nxt = jnp.pad(lstm_bth, ((0, 0), (0, 1), (0, 0)))[:, 1:, :]
    conv = prev @ p["wm1"] + lstm_bth @ p["w0"] + nxt @ p["wp1"] + p["bc"]
    return jnp.maximum(conv, 0.0)


def make_params(key):
    params = {}
    keys = jax.random.split(key, len(PARAM_NAMES))
    shapes = {
        "wxi": (E, H), "wxf": (E, H), "wxg": (E, H), "wxo": (E, H),
        "whi": (H, H), "whf": (H, H), "whg": (H, H), "who": (H, H),
        "bi": (1, H), "bf": (1, H), "bg": (1, H), "bo": (1, H),
        "wm1": (H, F), "w0": (H, F), "wp1": (H, F),
        "bc": (1, F),
    }
    for k, name in zip(keys, PARAM_NAMES):
        params[name] = (0.1 * jax.random.normal(k, shapes[name])).astype(jnp.float32)
    return params


if __name__ == "__main__":
    root = jax.random.PRNGKey(0)
    k_ids, k_emb, k_params = jax.random.split(root, 3)

    # ids / mask exist only to mirror the PyTorch forward signature; the BERT
    # encoder is replaced by deterministic synthetic output embeddings.
    ids = jax.random.randint(k_ids, (B, T), 0, 1000)
    mask = jnp.ones((B, T), jnp.int32)
    embeds = jax.random.normal(k_emb, (B, T, E), dtype=jnp.float32)  # BERT output stand-in

    params = make_params(k_params)

    out = bert_lstm_cnn_forward(embeds, params)
    out = jax.block_until_ready(out)

    expected = ref_forward(embeds, params)
    assert out.shape == (B, T, F), out.shape
    assert jnp.allclose(out, expected, atol=2e-4, rtol=2e-4), "mismatch vs reference"

    print("KERNEL_OK")
</pallas_src>

<mosaic_0001>
module attributes {stable_mosaic.version = 11 : i64} {
  func.func @_kernel(%arg0: memref<64x32xf32, #tpu.memory_space<vmem>>, %arg1: memref<67x128xf32, #tpu.memory_space<vmem>>, %arg2: memref<97x384xf32, #tpu.memory_space<vmem>>, %arg3: memref<64x384xf32, #tpu.memory_space<vmem>>, %arg4: memref<80x32xf32, #tpu.memory_space<vmem>>) attributes {dimension_semantics = [], scalar_prefetch = 0 : i64, scratch_operands = 1 : i64, tpu.core_type = #tpu.core_type<tc>} {
    %c0 = arith.constant 0 : index
    %c0_0 = arith.constant 0 : index
    %0 = vector.load %arg1[%c0, %c0_0] : memref<67x128xf32, #tpu.memory_space<vmem>>, vector<32x128xf32>
    %c32 = arith.constant 32 : index
    %c0_1 = arith.constant 0 : index
    %1 = vector.load %arg1[%c32, %c0_1] : memref<67x128xf32, #tpu.memory_space<vmem>>, vector<32x128xf32>
    %c64 = arith.constant 64 : index
    %c0_2 = arith.constant 0 : index
    %2 = vector.load %arg1[%c64, %c0_2] : memref<67x128xf32, #tpu.memory_space<vmem>>, vector<1x128xf32>
    %c65 = arith.constant 65 : index
    %c0_3 = arith.constant 0 : index
    %3 = vector.load %arg1[%c65, %c0_3] : memref<67x128xf32, #tpu.memory_space<vmem>>, vector<1x128xf32>
    %4 = vector.shape_cast %3 : vector<1x128xf32> to vector<1x128xf32>
    %5 = vector.broadcast %4 : vector<1x128xf32> to vector<8x128xf32>
    %c66 = arith.constant 66 : index
    %c0_4 = arith.constant 0 : index
    %6 = vector.load %arg1[%c66, %c0_4] : memref<67x128xf32, #tpu.memory_space<vmem>>, vector<1x128xf32>
    %7 = vector.shape_cast %6 : vector<1x128xf32> to vector<1x128xf32>
    %8 = vector.broadcast %7 : vector<1x128xf32> to vector<8x128xf32>
    %c0_5 = arith.constant 0 : index
    %c0_6 = arith.constant 0 : index
    %9 = vector.load %arg0[%c0_5, %c0_6] : memref<64x32xf32, #tpu.memory_space<vmem>>, vector<64x32xf32>
    %cst = arith.constant dense<0.000000e+00> : vector<64x128xf32>
    %10 = tpu.matmul %9, %0, %cst {dimension_numbers = #tpu.dot_dimension_numbers<[1], [0], [0], [1], [0, 0, 1, 1], [], []>} : vector<64x32xf32>, vector<32x128xf32>, vector<64x128xf32> -> vector<64x128xf32>
    %11 = vector.broadcast %2 : vector<1x128xf32> to vector<64x128xf32>
    %12 = arith.addf %10, %11 : vector<64x128xf32>
    %cst_7 = arith.constant 0.000000e+00 : f32
    %13 = vector.broadcast %cst_7 : f32 to vector<8x32xf32>
    %c0_8 = arith.constant 0 : index
    %c0_9 = arith.constant 0 : index
    %14 = vector.load %arg4[%c0_8, %c0_9] : memref<80x32xf32, #tpu.memory_space<vmem>>, vector<8x32xf32>
    tpu.vector_store %arg4[%c0_8, %c0_9], %13 {strides = array<i32>} : memref<80x32xf32, #tpu.memory_space<vmem>>, vector<8x32xf32>,
    %cst_10 = arith.constant 0.000000e+00 : f32
    %15 = vector.broadcast %cst_10 : f32 to vector<8x32xf32>
    %c72 = arith.constant 72 : index
    %c0_11 = arith.constant 0 : index
    %16 = vector.load %arg4[%c72, %c0_11] : memref<80x32xf32, #tpu.memory_space<vmem>>, vector<8x32xf32>
    tpu.vector_store %arg4[%c72, %c0_11], %15 {strides = array<i32>} : memref<80x32xf32, #tpu.memory_space<vmem>>, vector<8x32xf32>,
    %cst_12 = arith.constant 0.000000e+00 : f32
    %17 = vector.broadcast %cst_12 : f32 to vector<8x32xf32>
    %cst_13 = arith.constant 0.000000e+00 : f32
    %18 = vector.broadcast %cst_13 : f32 to vector<8x32xf32>
    %19 = vector.extract_strided_slice %12 {offsets = [0, 0], sizes = [8, 128], strides = [1, 1]} : vector<64x128xf32> to vector<8x128xf32>
    %cst_14 = arith.constant dense<0.000000e+00> : vector<8x128xf32>
    %20 = tpu.matmul %17, %1, %cst_14 {dimension_numbers = #tpu.dot_dimension_numbers<[1], [0], [0], [1], [0, 0, 1, 1], [], []>} : vector<8x32xf32>, vector<32x128xf32>, vector<8x128xf32> -> vector<8x128xf32>
    %21 = arith.addf %19, %20 : vector<8x128xf32>
    %22 = math.tanh %21 : vector<8x128xf32>
    %23 = arith.mulf %22, %5 : vector<8x128xf32>
    %24 = arith.addf %23, %8 : vector<8x128xf32>
    %25 = vector.extract_strided_slice %24 {offsets = [0, 0], sizes = [8, 32], strides = [1, 1]} : vector<8x128xf32> to vector<8x32xf32>
    %26 = vector.extract_strided_slice %24 {offsets = [0, 32], sizes = [8, 32], strides = [1, 1]} : vector<8x128xf32> to vector<8x32xf32>
    %27 = vector.extract_strided_slice %24 {offsets = [0, 64], sizes = [8, 32], strides = [1, 1]} : vector<8x128xf32> to vector<8x32xf32>
    %28 = vector.extract_strided_slice %24 {offsets = [0, 96], sizes = [8, 32], strides = [1, 1]} : vector<8x128xf32> to vector<8x32xf32>
    %29 = arith.mulf %26, %18 : vector<8x32xf32>
    %30 = arith.mulf %25, %27 : vector<8x32xf32>
    %31 = arith.addf %29, %30 : vector<8x32xf32>
    %32 = math.tanh %31 : vector<8x32xf32>
    %33 = arith.mulf %28, %32 : vector<8x32xf32>
    %c8 = arith.constant 8 : index
    %c0_15 = arith.constant 0 : index
    %34 = vector.load %arg4[%c8, %c0_15] : memref<80x32xf32, #tpu.memory_space<vmem>>, vector<8x32xf32>
    tpu.vector_store %arg4[%c8, %c0_15], %33 {strides = array<i32>} : memref<80x32xf32, #tpu.memory_space<vmem>>, vector<8x32xf32>,
    %35 = vector.extract_strided_slice %12 {offsets = [8, 0], sizes = [8, 128], strides = [1, 1]} : vector<64x128xf32> to vector<8x128xf32>
    %cst_16 = arith.constant dense<0.000000e+00> : vector<8x128xf32>
    %36 = tpu.matmul %33, %1, %cst_16 {dimension_numbers = #tpu.dot_dimension_numbers<[1], [0], [0], [1], [0, 0, 1, 1], [], []>} : vector<8x32xf32>, vector<32x128xf32>, vector<8x128xf32> -> vector<8x128xf32>
    %37 = arith.addf %35, %36 : vector<8x128xf32>
    %38 = math.tanh %37 : vector<8x128xf32>
    %39 = arith.mulf %38, %5 : vector<8x128xf32>
    %40 = arith.addf %39, %8 : vector<8x128xf32>
    %41 = vector.extract_strided_slice %40 {offsets = [0, 0], sizes = [8, 32], strides = [1, 1]} : vector<8x128xf32> to vector<8x32xf32>
    %42 = vector.extract_strided_slice %40 {offsets = [0, 32], sizes = [8, 32], strides = [1, 1]} : vector<8x128xf32> to vector<8x32xf32>
    %43 = vector.extract_strided_slice %40 {offsets = [0, 64], sizes = [8, 32], strides = [1, 1]} : vector<8x128xf32> to vector<8x32xf32>
    %44 = vector.extract_strided_slice %40 {offsets = [0, 96], sizes = [8, 32], strides = [1, 1]} : vector<8x128xf32> to vector<8x32xf32>
    %45 = arith.mulf %42, %31 : vector<8x32xf32>
    %46 = arith.mulf %41, %43 : vector<8x32xf32>
    %47 = arith.addf %45, %46 : vector<8x32xf32>
    %48 = math.tanh %47 : vector<8x32xf32>
    %49 = arith.mulf %44, %48 : vector<8x32xf32>
    %c16 = arith.constant 16 : index
    %c0_17 = arith.constant 0 : index
    %50 = vector.load %arg4[%c16, %c0_17] : memref<80x32xf32, #tpu.memory_space<vmem>>, vector<8x32xf32>
    tpu.vector_store %arg4[%c16, %c0_17], %49 {strides = array<i32>} : memref<80x32xf32, #tpu.memory_space<vmem>>, vector<8x32xf32>,
    %51 = vector.extract_strided_slice %12 {offsets = [16, 0], sizes = [8, 128], strides = [1, 1]} : vector<64x128xf32> to vector<8x128xf32>
    %cst_18 = arith.constant dense<0.000000e+00> : vector<8x128xf32>
    %52 = tpu.matmul %49, %1, %cst_18 {dimension_numbers = #tpu.dot_dimension_numbers<[1], [0], [0], [1], [0, 0, 1, 1], [], []>} : vector<8x32xf32>, vector<32x128xf32>, vector<8x128xf32> -> vector<8x128xf32>
    %53 = arith.addf %51, %52 : vector<8x128xf32>
    %54 = math.tanh %53 : vector<8x128xf32>
    %55 = arith.mulf %54, %5 : vector<8x128xf32>
    %56 = arith.addf %55, %8 : vector<8x128xf32>
    %57 = vector.extract_strided_slice %56 {offsets = [0, 0], sizes = [8, 32], strides = [1, 1]} : vector<8x128xf32> to vector<8x32xf32>
    %58 = vector.extract_strided_slice %56 {offsets = [0, 32], sizes = [8, 32], strides = [1, 1]} : vector<8x128xf32> to vector<8x32xf32>
    %59 = vector.extract_strided_slice %56 {offsets = [0, 64], sizes = [8, 32], strides = [1, 1]} : vector<8x128xf32> to vector<8x32xf32>
    %60 = vector.extract_strided_slice %56 {offsets = [0, 96], sizes = [8, 32], strides = [1, 1]} : vector<8x128xf32> to vector<8x32xf32>
    %61 = arith.mulf %58, %47 : vector<8x32xf32>
    %62 = arith.mulf %57, %59 : vector<8x32xf32>
    %63 = arith.addf %61, %62 : vector<8x32xf32>
    %64 = math.tanh %63 : vector<8x32xf32>
    %65 = arith.mulf %60, %64 : vector<8x32xf32>
    %c24 = arith.constant 24 : index
    %c0_19 = arith.constant 0 : index
    %66 = vector.load %arg4[%c24, %c0_19] : memref<80x32xf32, #tpu.memory_space<vmem>>, vector<8x32xf32>
    tpu.vector_store %arg4[%c24, %c0_19], %65 {strides = array<i32>} : memref<80x32xf32, #tpu.memory_space<vmem>>, vector<8x32xf32>,
    %67 = vector.extract_strided_slice %12 {offsets = [24, 0], sizes = [8, 128], strides = [1, 1]} : vector<64x128xf32> to vector<8x128xf32>
    %cst_20 = arith.constant dense<0.000000e+00> : vector<8x128xf32>
    %68 = tpu.matmul %65, %1, %cst_20 {dimension_numbers = #tpu.dot_dimension_numbers<[1], [0], [0], [1], [0, 0, 1, 1], [], []>} : vector<8x32xf32>, vector<32x128xf32>, vector<8x128xf32> -> vector<8x128xf32>
    %69 = arith.addf %67, %68 : vector<8x128xf32>
    %70 = math.tanh %69 : vector<8x128xf32>
    %71 = arith.mulf %70, %5 : vector<8x128xf32>
    %72 = arith.addf %71, %8 : vector<8x128xf32>
    %73 = vector.extract_strided_slice %72 {offsets = [0, 0], sizes = [8, 32], strides = [1, 1]} : vector<8x128xf32> to vector<8x32xf32>
    %74 = vector.extract_strided_slice %72 {offsets = [0, 32], sizes = [8, 32], strides = [1, 1]} : vector<8x128xf32> to vector<8x32xf32>
    %75 = vector.extract_strided_slice %72 {offsets = [0, 64], sizes = [8, 32], strides = [1, 1]} : vector<8x128xf32> to vector<8x32xf32>
    %76 = vector.extract_strided_slice %72 {offsets = [0, 96], sizes = [8, 32], strides = [1, 1]} : vector<8x128xf32> to vector<8x32xf32>
    %77 = arith.mulf %74, %63 : vector<8x32xf32>
    %78 = arith.mulf %73, %75 : vector<8x32xf32>
    %79 = arith.addf %77, %78 : vector<8x32xf32>
    %80 = math.tanh %79 : vector<8x32xf32>
    %81 = arith.mulf %76, %80 : vector<8x32xf32>
    %c32_21 = arith.constant 32 : index
    %c0_22 = arith.constant 0 : index
    %82 = vector.load %arg4[%c32_21, %c0_22] : memref<80x32xf32, #tpu.memory_space<vmem>>, vector<8x32xf32>
    tpu.vector_store %arg4[%c32_21, %c0_22], %81 {strides = array<i32>} : memref<80x32xf32, #tpu.memory_space<vmem>>, vector<8x32xf32>,
    %83 = vector.extract_strided_slice %12 {offsets = [32, 0], sizes = [8, 128], strides = [1, 1]} : vector<64x128xf32> to vector<8x128xf32>
    %cst_23 = arith.constant dense<0.000000e+00> : vector<8x128xf32>
    %84 = tpu.matmul %81, %1, %cst_23 {dimension_numbers = #tpu.dot_dimension_numbers<[1], [0], [0], [1], [0, 0, 1, 1], [], []>} : vector<8x32xf32>, vector<32x128xf32>, vector<8x128xf32> -> vector<8x128xf32>
    %85 = arith.addf %83, %84 : vector<8x128xf32>
    %86 = math.tanh %85 : vector<8x128xf32>
    %87 = arith.mulf %86, %5 : vector<8x128xf32>
    %88 = arith.addf %87, %8 : vector<8x128xf32>
    %89 = vector.extract_strided_slice %88 {offsets = [0, 0], sizes = [8, 32], strides = [1, 1]} : vector<8x128xf32> to vector<8x32xf32>
    %90 = vector.extract_strided_slice %88 {offsets = [0, 32], sizes = [8, 32], strides = [1, 1]} : vector<8x128xf32> to vector<8x32xf32>
    %91 = vector.extract_strided_slice %88 {offsets = [0, 64], sizes = [8, 32], strides = [1, 1]} : vector<8x128xf32> to vector<8x32xf32>
    %92 = vector.extract_strided_slice %88 {offsets = [0, 96], sizes = [8, 32], strides = [1, 1]} : vector<8x128xf32> to vector<8x32xf32>
    %93 = arith.mulf %90, %79 : vector<8x32xf32>
    %94 = arith.mulf %89, %91 : vector<8x32xf32>
    %95 = arith.addf %93, %94 : vector<8x32xf32>
    %96 = math.tanh %95 : vector<8x32xf32>
    %97 = arith.mulf %92, %96 : vector<8x32xf32>
    %c40 = arith.constant 40 : index
    %c0_24 = arith.constant 0 : index
    %98 = vector.load %arg4[%c40, %c0_24] : memref<80x32xf32, #tpu.memory_space<vmem>>, vector<8x32xf32>
    tpu.vector_store %arg4[%c40, %c0_24], %97 {strides = array<i32>} : memref<80x32xf32, #tpu.memory_space<vmem>>, vector<8x32xf32>,
    %99 = vector.extract_strided_slice %12 {offsets = [40, 0], sizes = [8, 128], strides = [1, 1]} : vector<64x128xf32> to vector<8x128xf32>
    %cst_25 = arith.constant dense<0.000000e+00> : vector<8x128xf32>
    %100 = tpu.matmul %97, %1, %cst_25 {dimension_numbers = #tpu.dot_dimension_numbers<[1], [0], [0], [1], [0, 0, 1, 1], [], []>} : vector<8x32xf32>, vector<32x128xf32>, vector<8x128xf32> -> vector<8x128xf32>
    %101 = arith.addf %99, %100 : vector<8x128xf32>
    %102 = math.tanh %101 : vector<8x128xf32>
    %103 = arith.mulf %102, %5 : vector<8x128xf32>
    %104 = arith.addf %103, %8 : vector<8x128xf32>
    %105 = vector.extract_strided_slice %104 {offsets = [0, 0], sizes = [8, 32], strides = [1, 1]} : vector<8x128xf32> to vector<8x32xf32>
    %106 = vector.extract_strided_slice %104 {offsets = [0, 32], sizes = [8, 32], strides = [1, 1]} : vector<8x128xf32> to vector<8x32xf32>
    %107 = vector.extract_strided_slice %104 {offsets = [0, 64], sizes = [8, 32], strides = [1, 1]} : vector<8x128xf32> to vector<8x32xf32>
    %108 = vector.extract_strided_slice %104 {offsets = [0, 96], sizes = [8, 32], strides = [1, 1]} : vector<8x128xf32> to vector<8x32xf32>
    %109 = arith.mulf %106, %95 : vector<8x32xf32>
    %110 = arith.mulf %105, %107 : vector<8x32xf32>
    %111 = arith.addf %109, %110 : vector<8x32xf32>
    %112 = math.tanh %111 : vector<8x32xf32>
    %113 = arith.mulf %108, %112 : vector<8x32xf32>
    %c48 = arith.constant 48 : index
    %c0_26 = arith.constant 0 : index
    %114 = vector.load %arg4[%c48, %c0_26] : memref<80x32xf32, #tpu.memory_space<vmem>>, vector<8x32xf32>
    tpu.vector_store %arg4[%c48, %c0_26], %113 {strides = array<i32>} : memref<80x32xf32, #tpu.memory_space<vmem>>, vector<8x32xf32>,
    %115 = vector.extract_strided_slice %12 {offsets = [48, 0], sizes = [8, 128], strides = [1, 1]} : vector<64x128xf32> to vector<8x128xf32>
    %cst_27 = arith.constant dense<0.000000e+00> : vector<8x128xf32>
    %116 = tpu.matmul %113, %1, %cst_27 {dimension_numbers = #tpu.dot_dimension_numbers<[1], [0], [0], [1], [0, 0, 1, 1], [], []>} : vector<8x32xf32>, vector<32x128xf32>, vector<8x128xf32> -> vector<8x128xf32>
    %117 = arith.addf %115, %116 : vector<8x128xf32>
    %118 = math.tanh %117 : vector<8x128xf32>
    %119 = arith.mulf %118, %5 : vector<8x128xf32>
    %120 = arith.addf %119, %8 : vector<8x128xf32>
    %121 = vector.extract_strided_slice %120 {offsets = [0, 0], sizes = [8, 32], strides = [1, 1]} : vector<8x128xf32> to vector<8x32xf32>
    %122 = vector.extract_strided_slice %120 {offsets = [0, 32], sizes = [8, 32], strides = [1, 1]} : vector<8x128xf32> to vector<8x32xf32>
    %123 = vector.extract_strided_slice %120 {offsets = [0, 64], sizes = [8, 32], strides = [1, 1]} : vector<8x128xf32> to vector<8x32xf32>
    %124 = vector.extract_strided_slice %120 {offsets = [0, 96], sizes = [8, 32], strides = [1, 1]} : vector<8x128xf32> to vector<8x32xf32>
    %125 = arith.mulf %122, %111 : vector<8x32xf32>
    %126 = arith.mulf %121, %123 : vector<8x32xf32>
    %127 = arith.addf %125, %126 : vector<8x32xf32>
    %128 = math.tanh %127 : vector<8x32xf32>
    %129 = arith.mulf %124, %128 : vector<8x32xf32>
    %c56 = arith.constant 56 : index
    %c0_28 = arith.constant 0 : index
    %130 = vector.load %arg4[%c56, %c0_28] : memref<80x32xf32, #tpu.memory_space<vmem>>, vector<8x32xf32>
    tpu.vector_store %arg4[%c56, %c0_28], %129 {strides = array<i32>} : memref<80x32xf32, #tpu.memory_space<vmem>>, vector<8x32xf32>,
    %131 = vector.extract_strided_slice %12 {offsets = [56, 0], sizes = [8, 128], strides = [1, 1]} : vector<64x128xf32> to vector<8x128xf32>
    %cst_29 = arith.constant dense<0.000000e+00> : vector<8x128xf32>
    %132 = tpu.matmul %129, %1, %cst_29 {dimension_numbers = #tpu.dot_dimension_numbers<[1], [0], [0], [1], [0, 0, 1, 1], [], []>} : vector<8x32xf32>, vector<32x128xf32>, vector<8x128xf32> -> vector<8x128xf32>
    %133 = arith.addf %131, %132 : vector<8x128xf32>
    %134 = math.tanh %133 : vector<8x128xf32>
    %135 = arith.mulf %134, %5 : vector<8x128xf32>
    %136 = arith.addf %135, %8 : vector<8x128xf32>
    %137 = vector.extract_strided_slice %136 {offsets = [0, 0], sizes = [8, 32], strides = [1, 1]} : vector<8x128xf32> to vector<8x32xf32>
    %138 = vector.extract_strided_slice %136 {offsets = [0, 32], sizes = [8, 32], strides = [1, 1]} : vector<8x128xf32> to vector<8x32xf32>
    %139 = vector.extract_strided_slice %136 {offsets = [0, 64], sizes = [8, 32], strides = [1, 1]} : vector<8x128xf32> to vector<8x32xf32>
    %140 = vector.extract_strided_slice %136 {offsets = [0, 96], sizes = [8, 32], strides = [1, 1]} : vector<8x128xf32> to vector<8x32xf32>
    %141 = arith.mulf %138, %127 : vector<8x32xf32>
    %142 = arith.mulf %137, %139 : vector<8x32xf32>
    %143 = arith.addf %141, %142 : vector<8x32xf32>
    %144 = math.tanh %143 : vector<8x32xf32>
    %145 = arith.mulf %140, %144 : vector<8x32xf32>
    %c64_30 = arith.constant 64 : index
    %c0_31 = arith.constant 0 : index
    %146 = vector.load %arg4[%c64_30, %c0_31] : memref<80x32xf32, #tpu.memory_space<vmem>>, vector<8x32xf32>
    tpu.vector_store %arg4[%c64_30, %c0_31], %145 {strides = array<i32>} : memref<80x32xf32, #tpu.memory_space<vmem>>, vector<8x32xf32>,
    %c0_32 = arith.constant 0 : index
    %c0_33 = arith.constant 0 : index
    %147 = vector.load %arg4[%c0_32, %c0_33] : memref<80x32xf32, #tpu.memory_space<vmem>>, vector<64x32xf32>
    %c8_34 = arith.constant 8 : index
    %c0_35 = arith.constant 0 : index
    %148 = vector.load %arg4[%c8_34, %c0_35] : memref<80x32xf32, #tpu.memory_space<vmem>>, vector<64x32xf32>
    %c16_36 = arith.constant 16 : index
    %c0_37 = arith.constant 0 : index
    %149 = vector.load %arg4[%c16_36, %c0_37] : memref<80x32xf32, #tpu.memory_space<vmem>>, vector<64x32xf32>
    %150 = tpu.concatenate %147, %148, %149 in 1 : vector<64x32xf32>, vector<64x32xf32>, vector<64x32xf32> -> vector<64x96xf32>
    %c0_38 = arith.constant 0 : index
    %c0_39 = arith.constant 0 : index
    %151 = vector.load %arg2[%c0_38, %c0_39] : memref<97x384xf32, #tpu.memory_space<vmem>>, vector<96x384xf32>
    %c96 = arith.constant 96 : index
    %c0_40 = arith.constant 0 : index
    %152 = vector.load %arg2[%c96, %c0_40] : memref<97x384xf32, #tpu.memory_space<vmem>>, vector<1x384xf32>
    %cst_41 = arith.constant dense<0.000000e+00> : vector<64x384xf32>
    %153 = tpu.matmul %150, %151, %cst_41 {dimension_numbers = #tpu.dot_dimension_numbers<[1], [0], [0], [1], [0, 0, 1, 1], [], []>} : vector<64x96xf32>, vector<96x384xf32>, vector<64x384xf32> -> vector<64x384xf32>
    %154 = vector.broadcast %152 : vector<1x384xf32> to vector<64x384xf32>
    %155 = arith.addf %153, %154 : vector<64x384xf32>
    %cst_42 = arith.constant 0.000000e+00 : f32
    %156 = vector.broadcast %cst_42 : f32 to vector<64x384xf32>
    %157 = arith.maximumf %155, %156 : vector<64x384xf32>
    %c0_43 = arith.constant 0 : index
    %c0_44 = arith.constant 0 : index
    %158 = vector.load %arg3[%c0_43, %c0_44] : memref<64x384xf32, #tpu.memory_space<vmem>>, vector<64x384xf32>
    tpu.vector_store %arg3[%c0_43, %c0_44], %157 {strides = array<i32>} : memref<64x384xf32, #tpu.memory_space<vmem>>, vector<64x384xf32>,
    return
  }
}

</mosaic_0001>

<llo_original>
// kernel: bert_lstm_cnn_forward.1
$region0: #{bert_lstm_cnn_forward.1}
  #allocation0 [shape = 'u32[]', space=smem, size = 0x4, offset = 0x4, fixed_abs, tag = 'smem constant byte address 0x4 - core index']
  #allocation1 [shape = 'u32[72,128]{1,0:T(1,128)}', space=vmem, size = 0x9000, scoped, tag = 'internal scratch']
  #allocation2 [shape = 'f32[80,32]{1,0:T(8,128)}', space=vmem, size = 0xa000, scoped, tag = 'scratch operand']
  %s0 = inlined_call_operand.vmem [shape: f32[64,32], index: 0, kind: input, shape index: {}]
  %s1 = inlined_call_operand.vmem [shape: f32[67,128], index: 1, kind: input, shape index: {}]
  %s2 = inlined_call_operand.vmem [shape: f32[97,384], index: 2, kind: input, shape index: {}]
  %s3 = inlined_call_operand.vmem [shape: f32[64,384], index: 3, kind: output, shape index: {}]
  %s4 = sld [smem:[#allocation0]]
  $region22: #{bert_lstm_cnn_forward.1} parent=0
    _
  %s6 = ssub.s32 1, %s4
  %s7 = scalar_select 0, %s6, %s4
  // Predicated region
  $region2: #{bert_lstm_cnn_forward.1} parent=0 // pred_check
    _
  $region3: #{bert_lstm_cnn_forward.1} parent=0 // pred_check_branch
    %9 = sbr.rel (0) target = $region5
  $region4: #{bert_lstm_cnn_forward.1} parent=0 // pred_region
    _
  $region5: #{bert_lstm_cnn_forward.1} parent=0 // pred_fallthru
    _
  // Predicated region
  $region6: #{bert_lstm_cnn_forward.1} parent=0 // pred_check
    _
  $region7: #{bert_lstm_cnn_forward.1} parent=0 // pred_check_branch
    %11 = sbr.rel (0) target = $region9
  $region8: #{bert_lstm_cnn_forward.1} parent=0 // pred_region
    _
  $region9: #{bert_lstm_cnn_forward.1} parent=0 // pred_fallthru
    _
  // Predicated region
  $region10: #{bert_lstm_cnn_forward.1} parent=0 // pred_check
    _
  $region11: #{bert_lstm_cnn_forward.1} parent=0 // pred_check_branch
    %13 = sbr.rel (0) target = $region13
  $region12: #{bert_lstm_cnn_forward.1} parent=0 // pred_region
    _
  $region13: #{bert_lstm_cnn_forward.1} parent=0 // pred_fallthru
    _
  %v14 = vld [vmem:[%s1] sm:$0xff]
  %v15 = vld [vmem:[%s1 + $0x8] sm:$0xff]
  %v16 = vld [vmem:[%s1 + $0x10] sm:$0xff]
  %v17 = vld [vmem:[%s1 + $0x18] sm:$0xff]
  %v18 = vld [vmem:[%s1 + $0x20] sm:$0xff]
  %v19 = vld [vmem:[%s1 + $0x28] sm:$0xff]
  %v20 = vld [vmem:[%s1 + $0x30] sm:$0xff]
  %v21 = vld [vmem:[%s1 + $0x38] sm:$0xff]
  %v22 = vld [vmem:[%s1 + $0x40] sm:$0x1]
  %v23 = vld [vmem:[%s1 + $0x41] sm:$0x1]
  %v24 = vperm.slane %v23, 0
  %v25 = vld [vmem:[%s1 + $0x42] sm:$0x1]
  %v26 = vperm.slane %v25, 0
  %v27 = vld [vmem:[%s0] sm:$0xff]
  %v28 = vld [vmem:[%s0 + $0x8] sm:$0xff]
  %v29 = vld [vmem:[%s0 + $0x10] sm:$0xff]
  %v30 = vld [vmem:[%s0 + $0x18] sm:$0xff]
  %v31 = vld [vmem:[%s0 + $0x20] sm:$0xff]
  %v32 = vld [vmem:[%s0 + $0x28] sm:$0xff]
  %v33 = vld [vmem:[%s0 + $0x30] sm:$0xff]
  %v34 = vld [vmem:[%s0 + $0x38] sm:$0xff]
  %v35 = vperm.slane %v22, 0
  %vm36 = vcmask 261120
  %v38 = vsel %vm36, %v27, 0
  %v41 = vsel %vm36, %v28, 0
  %v44 = vsel %vm36, %v29, 0
  %v47 = vsel %vm36, %v30, 0
  %v50 = vsel %vm36, %v31, 0
  %v53 = vsel %vm36, %v32, 0
  %v56 = vsel %vm36, %v33, 0
  %v59 = vsel %vm36, %v34, 0
  %61 = vmatpush.msra.mxu0 0.0
  %62 = vmatpush.msra.mxu0 0.0
  %63 = vmatpush.msra.mxu0 0.0
  %64 = vmatpush.msra.mxu0 0.0
  %65 = vmatpush.msra.mxu0 0.0
  %66 = vmatpush.msra.mxu0 0.0
  %67 = vmatpush.msra.mxu0 0.0
  %68 = vmatpush.msra.mxu0 0.0
  %69 = vmatpush.msra.mxu0 0.0
  %70 = vmatpush.msra.mxu0 0.0
  %71 = vmatpush.msra.mxu0 0.0
  %72 = vmatpush.msra.mxu0 0.0
  %73 = vmatpush.msra.mxu0 %v17
  %74 = vmatpush.msra.mxu0 %v16
  %75 = vmatpush.msra.mxu0 %v15
  %76 = vmatpush.msra.mxu0 %v14
  %77 = vmatmul.f32.gmra.mxu0 %v38
  %v78 = vpop.f32.mrf.mxu0
  %v79 = vadd.f32 %v35, %v78
  %80 = vmatmul.f32.gmra.mxu0 %v41
  %v81 = vpop.f32.mrf.mxu0
  %v82 = vadd.f32 %v35, %v81
  %83 = vmatmul.f32.gmra.mxu0 %v44
  %v84 = vpop.f32.mrf.mxu0
  %v85 = vadd.f32 %v35, %v84
  %86 = vmatmul.f32.gmra.mxu0 %v47
  %v87 = vpop.f32.mrf.mxu0
  %v88 = vadd.f32 %v35, %v87
  %89 = vmatmul.f32.gmra.mxu0 %v50
  %v90 = vpop.f32.mrf.mxu0
  %v91 = vadd.f32 %v35, %v90
  %92 = vmatmul.f32.gmra.mxu0 %v53
  %v93 = vpop.f32.mrf.mxu0
  %v94 = vadd.f32 %v35, %v93
  %95 = vmatmul.f32.gmra.mxu0 %v56
  %v96 = vpop.f32.mrf.mxu0
  %v97 = vadd.f32 %v35, %v96
  %98 = vmatmul.f32.gmra.mxu0 %v59
  %v99 = vpop.f32.mrf.mxu0
  %v100 = vadd.f32 %v35, %v99
  %101 = vdwg.mxu0
  %102 = vst.msk [vmem:[#allocation2] sm:$0xff] %vm36, 0.0
  %103 = vst.msk [vmem:[#allocation2 + $0x48] sm:$0xff] %vm36, 0.0
  %v105 = vsel %vm36, 0.0, 0
  %107 = vmatpush.msra.mxu0 0.0
  %108 = vmatpush.msra.mxu0 0.0
  %109 = vmatpush.msra.mxu0 0.0
  %110 = vmatpush.msra.mxu0 0.0
  %111 = vmatpush.msra.mxu0 0.0
  %112 = vmatpush.msra.mxu0 0.0
  %113 = vmatpush.msra.mxu0 0.0
  %114 = vmatpush.msra.mxu0 0.0
  %115 = vmatpush.msra.mxu0 0.0
  %116 = vmatpush.msra.mxu0 0.0
  %117 = vmatpush.msra.mxu0 0.0
  %118 = vmatpush.msra.mxu0 0.0
  %119 = vmatpush.msra.mxu0 %v21
  %120 = vmatpush.msra.mxu0 %v20
  %121 = vmatpush.msra.mxu0 %v19
  %122 = vmatpush.msra.mxu0 %v18
  %123 = vmatmul.f32.gmra.mxu0 %v105
  %v124 = vpop.f32.mrf.mxu0
  %v125 = vadd.f32 0.0, %v124
  %126 = vdwg.mxu0
  %v127 = vadd.f32 %v79, %v125
  %v128 = vtanh.pop %v127
  %v129 = vmul.f32 %v128, %v24
  %v130 = vadd.f32 %v129, %v26
  %v131 = vmul.f32 %v130, 0.0
  %133 = vrot.lane.b32.xlu0 %v130, 64
  %v134 = vpop.permute.xlu0 %133
  %v136 = vmul.f32 %v130, %v134
  %138 = vrot.lane.b32.xlu0 %v136, 32
  %v139 = vpop.permute.xlu0 %138
  %v141 = vadd.f32 %v131, %v139
  %v142 = vtanh.pop %v141
  %144 = vrot.lane.b32.xlu0 %v142, 64
  %v145 = vpop.permute.xlu0 %144
  %v147 = vmul.f32 %v130, %v145
  %149 = vrot.lane.b32.xlu0 %v147, 32
  %v150 = vpop.permute.xlu0 %149
  %152 = vst.msk [vmem:[#allocation2 + $0x8] sm:$0xff] %vm36, %v150
  %v153 = vsel %vm36, %v150, 0
  %155 = vmatpush.msra.mxu0 0.0
  %156 = vmatpush.msra.mxu0 0.0
  %157 = vmatpush.msra.mxu0 0.0
  %158 = vmatpush.msra.mxu0 0.0
  %159 = vmatpush.msra.mxu0 0.0
  %160 = vmatpush.msra.mxu0 0.0
  %161 = vmatpush.msra.mxu0 0.0
  %162 = vmatpush.msra.mxu0 0.0
  %163 = vmatpush.msra.mxu0 0.0
  %164 = vmatpush.msra.mxu0 0.0
  %165 = vmatpush.msra.mxu0 0.0
  %166 = vmatpush.msra.mxu0 0.0
  %167 = vmatpush.msra.mxu0 %v21
  %168 = vmatpush.msra.mxu0 %v20
  %169 = vmatpush.msra.mxu0 %v19
  %170 = vmatpush.msra.mxu0 %v18
  %171 = vmatmul.f32.gmra.mxu0 %v153
  %v172 = vpop.f32.mrf.mxu0
  %v173 = vadd.f32 0.0, %v172
  %174 = vdwg.mxu0
  %v175 = vadd.f32 %v82, %v173
  %v176 = vtanh.pop %v175
  %v177 = vmul.f32 %v176, %v24
  %v178 = vadd.f32 %v177, %v26
  %v179 = vmul.f32 %v178, %v141
  %181 = vrot.lane.b32.xlu0 %v178, 64
  %v182 = vpop.permute.xlu0 %181
  %v184 = vmul.f32 %v178, %v182
  %186 = vrot.lane.b32.xlu0 %v184, 32
  %v187 = vpop.permute.xlu0 %186
  %v189 = vadd.f32 %v179, %v187
  %v190 = vtanh.pop %v189
  %192 = vrot.lane.b32.xlu0 %v190, 64
  %v193 = vpop.permute.xlu0 %192
  %v195 = vmul.f32 %v178, %v193
  %197 = vrot.lane.b32.xlu0 %v195, 32
  %v198 = vpop.permute.xlu0 %197
  %200 = vst.msk [vmem:[#allocation2 + $0x10] sm:$0xff] %vm36, %v198
  %v201 = vsel %vm36, %v198, 0
  %203 = vmatpush.msra.mxu0 0.0
  %204 = vmatpush.msra.mxu0 0.0
  %205 = vmatpush.msra.mxu0 0.0
  %206 = vmatpush.msra.mxu0 0.0
  %207 = vmatpush.msra.mxu0 0.0
  %208 = vmatpush.msra.mxu0 0.0
  %209 = vmatpush.msra.mxu0 0.0
  %210 = vmatpush.msra.mxu0 0.0
  %211 = vmatpush.msra.mxu0 0.0
  %212 = vmatpush.msra.mxu0 0.0
  %213 = vmatpush.msra.mxu0 0.0
  %214 = vmatpush.msra.mxu0 0.0
  %215 = vmatpush.msra.mxu0 %v21
  %216 = vmatpush.msra.mxu0 %v20
  %217 = vmatpush.msra.mxu0 %v19
  %218 = vmatpush.msra.mxu0 %v18
  %219 = vmatmul.f32.gmra.mxu0 %v201
  %v220 = vpop.f32.mrf.mxu0
  %v221 = vadd.f32 0.0, %v220
  %222 = vdwg.mxu0
  %v223 = vadd.f32 %v85, %v221
  %v224 = vtanh.pop %v223
  %v225 = vmul.f32 %v224, %v24
  %v226 = vadd.f32 %v225, %v26
  %v227 = vmul.f32 %v226, %v189
  %229 = vrot.lane.b32.xlu0 %v226, 64
  %v230 = vpop.permute.xlu0 %229
  %v232 = vmul.f32 %v226, %v230
  %234 = vrot.lane.b32.xlu0 %v232, 32
  %v235 = vpop.permute.xlu0 %234
  %v237 = vadd.f32 %v227, %v235
  %v238 = vtanh.pop %v237
  %240 = vrot.lane.b32.xlu0 %v238, 64
  %v241 = vpop.permute.xlu0 %240
  %v243 = vmul.f32 %v226, %v241
  %245 = vrot.lane.b32.xlu0 %v243, 32
  %v246 = vpop.permute.xlu0 %245
  %248 = vst.msk [vmem:[#allocation2 + $0x18] sm:$0xff] %vm36, %v246
  %v249 = vsel %vm36, %v246, 0
  %251 = vmatpush.msra.mxu0 0.0
  %252 = vmatpush.msra.mxu0 0.0
  %253 = vmatpush.msra.mxu0 0.0
  %254 = vmatpush.msra.mxu0 0.0
  %255 = vmatpush.msra.mxu0 0.0
  %256 = vmatpush.msra.mxu0 0.0
  %257 = vmatpush.msra.mxu0 0.0
  %258 = vmatpush.msra.mxu0 0.0
  %259 = vmatpush.msra.mxu0 0.0
  %260 = vmatpush.msra.mxu0 0.0
  %261 = vmatpush.msra.mxu0 0.0
  %262 = vmatpush.msra.mxu0 0.0
  %263 = vmatpush.msra.mxu0 %v21
  %264 = vmatpush.msra.mxu0 %v20
  %265 = vmatpush.msra.mxu0 %v19
  %266 = vmatpush.msra.mxu0 %v18
  %267 = vmatmul.f32.gmra.mxu0 %v249
  %v268 = vpop.f32.mrf.mxu0
  %v269 = vadd.f32 0.0, %v268
  %270 = vdwg.mxu0
  %v271 = vadd.f32 %v88, %v269
  %v272 = vtanh.pop %v271
  %v273 = vmul.f32 %v272, %v24
  %v274 = vadd.f32 %v273, %v26
  %v275 = vmul.f32 %v274, %v237
  %277 = vrot.lane.b32.xlu0 %v274, 64
  %v278 = vpop.permute.xlu0 %277
  %v280 = vmul.f32 %v274, %v278
  %282 = vrot.lane.b32.xlu0 %v280, 32
  %v283 = vpop.permute.xlu0 %282
  %v285 = vadd.f32 %v275, %v283
  %v286 = vtanh.pop %v285
  %288 = vrot.lane.b32.xlu0 %v286, 64
  %v289 = vpop.permute.xlu0 %288
  %v291 = vmul.f32 %v274, %v289
  %293 = vrot.lane.b32.xlu0 %v291, 32
  %v294 = vpop.permute.xlu0 %293
  %296 = vst.msk [vmem:[#allocation2 + $0x20] sm:$0xff] %vm36, %v294
  %v297 = vsel %vm36, %v294, 0
  %299 = vmatpush.msra.mxu0 0.0
  %300 = vmatpush.msra.mxu0 0.0
  %301 = vmatpush.msra.mxu0 0.0
  %302 = vmatpush.msra.mxu0 0.0
  %303 = vmatpush.msra.mxu0 0.0
  %304 = vmatpush.msra.mxu0 0.0
  %305 = vmatpush.msra.mxu0 0.0
  %306 = vmatpush.msra.mxu0 0.0
  %307 = vmatpush.msra.mxu0 0.0
  %308 = vmatpush.msra.mxu0 0.0
  %309 = vmatpush.msra.mxu0 0.0
  %310 = vmatpush.msra.mxu0 0.0
  %311 = vmatpush.msra.mxu0 %v21
  %312 = vmatpush.msra.mxu0 %v20
  %313 = vmatpush.msra.mxu0 %v19
  %314 = vmatpush.msra.mxu0 %v18
  %315 = vmatmul.f32.gmra.mxu0 %v297
  %v316 = vpop.f32.mrf.mxu0
  %v317 = vadd.f32 0.0, %v316
  %318 = vdwg.mxu0
  %v319 = vadd.f32 %v91, %v317
  %v320 = vtanh.pop %v319
  %v321 = vmul.f32 %v320, %v24
  %v322 = vadd.f32 %v321, %v26
  %v323 = vmul.f32 %v322, %v285
  %325 = vrot.lane.b32.xlu0 %v322, 64
  %v326 = vpop.permute.xlu0 %325
  %v328 = vmul.f32 %v322, %v326
  %330 = vrot.lane.b32.xlu0 %v328, 32
  %v331 = vpop.permute.xlu0 %330
  %v333 = vadd.f32 %v323, %v331
  %v334 = vtanh.pop %v333
  %336 = vrot.lane.b32.xlu0 %v334, 64
  %v337 = vpop.permute.xlu0 %336
  %v339 = vmul.f32 %v322, %v337
  %341 = vrot.lane.b32.xlu0 %v339, 32
  %v342 = vpop.permute.xlu0 %341
  %344 = vst.msk [vmem:[#allocation2 + $0x28] sm:$0xff] %vm36, %v342
  %v345 = vsel %vm36, %v342, 0
  %347 = vmatpush.msra.mxu0 0.0
  %348 = vmatpush.msra.mxu0 0.0
  %349 = vmatpush.msra.mxu0 0.0
  %350 = vmatpush.msra.mxu0 0.0
  %351 = vmatpush.msra.mxu0 0.0
  %352 = vmatpush.msra.mxu0 0.0
  %353 = vmatpush.msra.mxu0 0.0
  %354 = vmatpush.msra.mxu0 0.0
  %355 = vmatpush.msra.mxu0 0.0
  %356 = vmatpush.msra.mxu0 0.0
  %357 = vmatpush.msra.mxu0 0.0
  %358 = vmatpush.msra.mxu0 0.0
  %359 = vmatpush.msra.mxu0 %v21
  %360 = vmatpush.msra.mxu0 %v20
  %361 = vmatpush.msra.mxu0 %v19
  %362 = vmatpush.msra.mxu0 %v18
  %363 = vmatmul.f32.gmra.mxu0 %v345
  %v364 = vpop.f32.mrf.mxu0
  %v365 = vadd.f32 0.0, %v364
  %366 = vdwg.mxu0
  %v367 = vadd.f32 %v94, %v365
  %v368 = vtanh.pop %v367
  %v369 = vmul.f32 %v368, %v24
  %v370 = vadd.f32 %v369, %v26
  %v371 = vmul.f32 %v370, %v333
  %373 = vrot.lane.b32.xlu0 %v370, 64
  %v374 = vpop.permute.xlu0 %373
  %v376 = vmul.f32 %v370, %v374
  %378 = vrot.lane.b32.xlu0 %v376, 32
  %v379 = vpop.permute.xlu0 %378
  %v381 = vadd.f32 %v371, %v379
  %v382 = vtanh.pop %v381
  %384 = vrot.lane.b32.xlu0 %v382, 64
  %v385 = vpop.permute.xlu0 %384
  %v387 = vmul.f32 %v370, %v385
  %389 = vrot.lane.b32.xlu0 %v387, 32
  %v390 = vpop.permute.xlu0 %389
  %392 = vst.msk [vmem:[#allocation2 + $0x30] sm:$0xff] %vm36, %v390
  %v393 = vsel %vm36, %v390, 0
  %395 = vmatpush.msra.mxu0 0.0
  %396 = vmatpush.msra.mxu0 0.0
  %397 = vmatpush.msra.mxu0 0.0
  %398 = vmatpush.msra.mxu0 0.0
  %399 = vmatpush.msra.mxu0 0.0
  %400 = vmatpush.msra.mxu0 0.0
  %401 = vmatpush.msra.mxu0 0.0
  %402 = vmatpush.msra.mxu0 0.0
  %403 = vmatpush.msra.mxu0 0.0
  %404 = vmatpush.msra.mxu0 0.0
  %405 = vmatpush.msra.mxu0 0.0
  %406 = vmatpush.msra.mxu0 0.0
  %407 = vmatpush.msra.mxu0 %v21
  %408 = vmatpush.msra.mxu0 %v20
  %409 = vmatpush.msra.mxu0 %v19
  %410 = vmatpush.msra.mxu0 %v18
  %411 = vmatmul.f32.gmra.mxu0 %v393
  %v412 = vpop.f32.mrf.mxu0
  %v413 = vadd.f32 0.0, %v412
  %414 = vdwg.mxu0
  %v415 = vadd.f32 %v97, %v413
  %v416 = vtanh.pop %v415
  %v417 = vmul.f32 %v416, %v24
  %v418 = vadd.f32 %v417, %v26
  %v419 = vmul.f32 %v418, %v381
  %421 = vrot.lane.b32.xlu0 %v418, 64
  %v422 = vpop.permute.xlu0 %421
  %v424 = vmul.f32 %v418, %v422
  %426 = vrot.lane.b32.xlu0 %v424, 32
  %v427 = vpop.permute.xlu0 %426
  %v429 = vadd.f32 %v419, %v427
  %v430 = vtanh.pop %v429
  %432 = vrot.lane.b32.xlu0 %v430, 64
  %v433 = vpop.permute.xlu0 %432
  %v435 = vmul.f32 %v418, %v433
  %437 = vrot.lane.b32.xlu0 %v435, 32
  %v438 = vpop.permute.xlu0 %437
  %440 = vst.msk [vmem:[#allocation2 + $0x38] sm:$0xff] %vm36, %v438
  %v441 = vsel %vm36, %v438, 0
  %443 = vmatpush.msra.mxu0 0.0
  %444 = vmatpush.msra.mxu0 0.0
  %445 = vmatpush.msra.mxu0 0.0
  %446 = vmatpush.msra.mxu0 0.0
  %447 = vmatpush.msra.mxu0 0.0
  %448 = vmatpush.msra.mxu0 0.0
  %449 = vmatpush.msra.mxu0 0.0
  %450 = vmatpush.msra.mxu0 0.0
  %451 = vmatpush.msra.mxu0 0.0
  %452 = vmatpush.msra.mxu0 0.0
  %453 = vmatpush.msra.mxu0 0.0
  %454 = vmatpush.msra.mxu0 0.0
  %455 = vmatpush.msra.mxu0 %v21
  %456 = vmatpush.msra.mxu0 %v20
  %457 = vmatpush.msra.mxu0 %v19
  %458 = vmatpush.msra.mxu0 %v18
  %459 = vmatmul.f32.gmra.mxu0 %v441
  %v460 = vpop.f32.mrf.mxu0
  %v461 = vadd.f32 0.0, %v460
  %462 = vdwg.mxu0
  %v463 = vadd.f32 %v100, %v461
  %v464 = vtanh.pop %v463
  %v465 = vmul.f32 %v464, %v24
  %v466 = vadd.f32 %v465, %v26
  %v467 = vmul.f32 %v466, %v429
  %469 = vrot.lane.b32.xlu0 %v466, 64
  %v470 = vpop.permute.xlu0 %469
  %v472 = vmul.f32 %v466, %v470
  %474 = vrot.lane.b32.xlu0 %v472, 32
  %v475 = vpop.permute.xlu0 %474
  %v477 = vadd.f32 %v467, %v475
  %v478 = vtanh.pop %v477
  %480 = vrot.lane.b32.xlu0 %v478, 64
  %v481 = vpop.permute.xlu0 %480
  %v483 = vmul.f32 %v466, %v481
  %485 = vrot.lane.b32.xlu0 %v483, 32
  %v486 = vpop.permute.xlu0 %485
  %488 = vst.msk [vmem:[#allocation2 + $0x40] sm:$0xff] %vm36, %v486
  %v489 = vld [vmem:[#allocation2] sm:$0xff]
  %v490 = vld [vmem:[#allocation2 + $0x8] sm:$0xff]
  %v491 = vld [vmem:[#allocation2 + $0x10] sm:$0xff]
  %v492 = vld [vmem:[#allocation2 + $0x18] sm:$0xff]
  %v493 = vld [vmem:[#allocation2 + $0x20] sm:$0xff]
  %v494 = vld [vmem:[#allocation2 + $0x28] sm:$0xff]
  %v495 = vld [vmem:[#allocation2 + $0x30] sm:$0xff]
  %v496 = vld [vmem:[#allocation2 + $0x38] sm:$0xff]
  %v497 = vld [vmem:[#allocation2 + $0x40] sm:$0xff]
  %v498 = vld [vmem:[#allocation2 + $0x48] sm:$0xff]
  %507 = vrot.lane.b32.xlu0 %v490, 32
  %v508 = vpop.permute.xlu0 %507
  %509 = vrot.lane.b32.xlu0 %v491, 32
  %v510 = vpop.permute.xlu0 %509
  %511 = vrot.lane.b32.xlu0 %v492, 32
  %v512 = vpop.permute.xlu0 %511
  %513 = vrot.lane.b32.xlu0 %v493, 32
  %v514 = vpop.permute.xlu0 %513
  %515 = vrot.lane.b32.xlu0 %v494, 32
  %v516 = vpop.permute.xlu0 %515
  %517 = vrot.lane.b32.xlu0 %v495, 32
  %v518 = vpop.permute.xlu0 %517
  %519 = vrot.lane.b32.xlu0 %v496, 32
  %v520 = vpop.permute.xlu0 %519
  %521 = vrot.lane.b32.xlu0 %v497, 32
  %v522 = vpop.permute.xlu0 %521
  %532 = vrot.lane.b32.xlu0 %v491, 64
  %v533 = vpop.permute.xlu0 %532
  %534 = vrot.lane.b32.xlu0 %v492, 64
  %v535 = vpop.permute.xlu0 %534
  %536 = vrot.lane.b32.xlu0 %v493, 64
  %v537 = vpop.permute.xlu0 %536
  %538 = vrot.lane.b32.xlu0 %v494, 64
  %v539 = vpop.permute.xlu0 %538
  %540 = vrot.lane.b32.xlu0 %v495, 64
  %v541 = vpop.permute.xlu0 %540
  %542 = vrot.lane.b32.xlu0 %v496, 64
  %v543 = vpop.permute.xlu0 %542
  %544 = vrot.lane.b32.xlu0 %v497, 64
  %v545 = vpop.permute.xlu0 %544
  %546 = vrot.lane.b32.xlu0 %v498, 64
  %v547 = vpop.permute.xlu0 %546
  %v556 = vsel %vm36, %v489, %v508
  %v557 = vsel %vm36, %v490, %v510
  %v558 = vsel %vm36, %v491, %v512
  %v559 = vsel %vm36, %v492, %v514
  %v560 = vsel %vm36, %v493, %v516
  %v561 = vsel %vm36, %v494, %v518
  %v562 = vsel %vm36, %v495, %v520
  %v563 = vsel %vm36, %v496, %v522
  %vm564 = vcmask 523264
  %v565 = vsel %vm564, %v556, %v533
  %v566 = vsel %vm564, %v557, %v535
  %v567 = vsel %vm564, %v558, %v537
  %v568 = vsel %vm564, %v559, %v539
  %v569 = vsel %vm564, %v560, %v541
  %v570 = vsel %vm564, %v561, %v543
  %v571 = vsel %vm564, %v562, %v545
  %v572 = vsel %vm564, %v563, %v547
  %v573 = vld [vmem:[%s2] sm:$0xff]
  %v574 = vld [vmem:[%s2 + $0x8] sm:$0xff]
  %v575 = vld [vmem:[%s2 + $0x10] sm:$0xff]
  %v576 = vld [vmem:[%s2 + $0x18] sm:$0xff]
  %v577 = vld [vmem:[%s2 + $0x20] sm:$0xff]
  %v578 = vld [vmem:[%s2 + $0x28] sm:$0xff]
  %v579 = vld [vmem:[%s2 + $0x30] sm:$0xff]
  %v580 = vld [vmem:[%s2 + $0x38] sm:$0xff]
  %v581 = vld [vmem:[%s2 + $0x40] sm:$0xff]
  %v582 = vld [vmem:[%s2 + $0x48] sm:$0xff]
  %v583 = vld [vmem:[%s2 + $0x50] sm:$0xff]
  %v584 = vld [vmem:[%s2 + $0x58] sm:$0xff]
  %v585 = vld [vmem:[%s2 + $0x60] sm:$0xff]
  %v586 = vld [vmem:[%s2 + $0x68] sm:$0xff]
  %v587 = vld [vmem:[%s2 + $0x70] sm:$0xff]
  %v588 = vld [vmem:[%s2 + $0x78] sm:$0xff]
  %v589 = vld [vmem:[%s2 + $0x80] sm:$0xff]
  %v590 = vld [vmem:[%s2 + $0x88] sm:$0xff]
  %v591 = vld [vmem:[%s2 + $0x90] sm:$0xff]
  %v592 = vld [vmem:[%s2 + $0x98] sm:$0xff]
  %v593 = vld [vmem:[%s2 + $0xa0] sm:$0xff]
  %v594 = vld [vmem:[%s2 + $0xa8] sm:$0xff]
  %v595 = vld [vmem:[%s2 + $0xb0] sm:$0xff]
  %v596 = vld [vmem:[%s2 + $0xb8] sm:$0xff]
  %v597 = vld [vmem:[%s2 + $0xc0] sm:$0xff]
  %v598 = vld [vmem:[%s2 + $0xc8] sm:$0xff]
  %v599 = vld [vmem:[%s2 + $0xd0] sm:$0xff]
  %v600 = vld [vmem:[%s2 + $0xd8] sm:$0xff]
  %v601 = vld [vmem:[%s2 + $0xe0] sm:$0xff]
  %v602 = vld [vmem:[%s2 + $0xe8] sm:$0xff]
  %v603 = vld [vmem:[%s2 + $0xf0] sm:$0xff]
  %v604 = vld [vmem:[%s2 + $0xf8] sm:$0xff]
  %v605 = vld [vmem:[%s2 + $0x100] sm:$0xff]
  %v606 = vld [vmem:[%s2 + $0x108] sm:$0xff]
  %v607 = vld [vmem:[%s2 + $0x110] sm:$0xff]
  %v608 = vld [vmem:[%s2 + $0x118] sm:$0xff]
  %s609 = scalar_lea.vmem %s2, 288
  %v610 = vld [vmem:[%s609] ss:$8 sm:$0x7]
  %v612 = vperm.slane %v610, 0
  %v613 = vperm.slane %v610, 1
  %v614 = vperm.slane %v610, 2
  %vm618 = vcmask 785408
  %v620 = vsel %vm618, %v565, 0
  %v623 = vsel %vm618, %v566, 0
  %v626 = vsel %vm618, %v567, 0
  %v629 = vsel %vm618, %v568, 0
  %v632 = vsel %vm618, %v569, 0
  %v635 = vsel %vm618, %v570, 0
  %v638 = vsel %vm618, %v571, 0
  %v641 = vsel %vm618, %v572, 0
  %643 = vmatpush.msra.mxu0 0.0
  %644 = vmatpush.msra.mxu0 0.0
  %645 = vmatpush.msra.mxu0 0.0
  %646 = vmatpush.msra.mxu0 0.0
  %647 = vmatpush.msra.mxu0 %v606
  %648 = vmatpush.msra.mxu0 %v603
  %649 = vmatpush.msra.mxu0 %v600
  %650 = vmatpush.msra.mxu0 %v597
  %651 = vmatpush.msra.mxu0 %v594
  %652 = vmatpush.msra.mxu0 %v591
  %653 = vmatpush.msra.mxu0 %v588
  %654 = vmatpush.msra.mxu0 %v585
  %655 = vmatpush.msra.mxu0 %v582
  %656 = vmatpush.msra.mxu0 %v579
  %657 = vmatpush.msra.mxu0 %v576
  %658 = vmatpush.msra.mxu0 %v573
  %659 = vmatmul.f32.gmra.mxu0 %v620
  %v660 = vpop.f32.mrf.mxu0
  %v661 = vadd.f32 %v612, %v660
  %662 = vmatmul.f32.gmra.mxu0 %v623
  %v663 = vpop.f32.mrf.mxu0
  %v664 = vadd.f32 %v612, %v663
  %665 = vmatmul.f32.gmra.mxu0 %v626
  %v666 = vpop.f32.mrf.mxu0
  %v667 = vadd.f32 %v612, %v666
  %668 = vmatmul.f32.gmra.mxu0 %v629
  %v669 = vpop.f32.mrf.mxu0
  %v670 = vadd.f32 %v612, %v669
  %671 = vmatmul.f32.gmra.mxu0 %v632
  %v672 = vpop.f32.mrf.mxu0
  %v673 = vadd.f32 %v612, %v672
  %674 = vmatmul.f32.gmra.mxu0 %v635
  %v675 = vpop.f32.mrf.mxu0
  %v676 = vadd.f32 %v612, %v675
  %677 = vmatmul.f32.gmra.mxu0 %v638
  %v678 = vpop.f32.mrf.mxu0
  %v679 = vadd.f32 %v612, %v678
  %680 = vmatmul.f32.gmra.mxu0 %v641
  %v681 = vpop.f32.mrf.mxu0
  %v682 = vadd.f32 %v612, %v681
  %683 = vdwg.mxu0
  %684 = vmatpush.msra.mxu0 0.0
  %685 = vmatpush.msra.mxu0 0.0
  %686 = vmatpush.msra.mxu0 0.0
  %687 = vmatpush.msra.mxu0 0.0
  %688 = vmatpush.msra.mxu0 %v607
  %689 = vmatpush.msra.mxu0 %v604
  %690 = vmatpush.msra.mxu0 %v601
  %691 = vmatpush.msra.mxu0 %v598
  %692 = vmatpush.msra.mxu0 %v595
  %693 = vmatpush.msra.mxu0 %v592
  %694 = vmatpush.msra.mxu0 %v589
  %695 = vmatpush.msra.mxu0 %v586
  %696 = vmatpush.msra.mxu0 %v583
  %697 = vmatpush.msra.mxu0 %v580
  %698 = vmatpush.msra.mxu0 %v577
  %699 = vmatpush.msra.mxu0 %v574
  %700 = vmatmul.f32.gmra.mxu0 %v620
  %v701 = vpop.f32.mrf.mxu0
  %v702 = vadd.f32 %v613, %v701
  %703 = vmatmul.f32.gmra.mxu0 %v623
  %v704 = vpop.f32.mrf.mxu0
  %v705 = vadd.f32 %v613, %v704
  %706 = vmatmul.f32.gmra.mxu0 %v626
  %v707 = vpop.f32.mrf.mxu0
  %v708 = vadd.f32 %v613, %v707
  %709 = vmatmul.f32.gmra.mxu0 %v629
  %v710 = vpop.f32.mrf.mxu0
  %v711 = vadd.f32 %v613, %v710
  %712 = vmatmul.f32.gmra.mxu0 %v632
  %v713 = vpop.f32.mrf.mxu0
  %v714 = vadd.f32 %v613, %v713
  %715 = vmatmul.f32.gmra.mxu0 %v635
  %v716 = vpop.f32.mrf.mxu0
  %v717 = vadd.f32 %v613, %v716
  %718 = vmatmul.f32.gmra.mxu0 %v638
  %v719 = vpop.f32.mrf.mxu0
  %v720 = vadd.f32 %v613, %v719
  %721 = vmatmul.f32.gmra.mxu0 %v641
  %v722 = vpop.f32.mrf.mxu0
  %v723 = vadd.f32 %v613, %v722
  %724 = vdwg.mxu0
  %725 = vmatpush.msra.mxu0 0.0
  %726 = vmatpush.msra.mxu0 0.0
  %727 = vmatpush.msra.mxu0 0.0
  %728 = vmatpush.msra.mxu0 0.0
  %729 = vmatpush.msra.mxu0 %v608
  %730 = vmatpush.msra.mxu0 %v605
  %731 = vmatpush.msra.mxu0 %v602
  %732 = vmatpush.msra.mxu0 %v599
  %733 = vmatpush.msra.mxu0 %v596
  %734 = vmatpush.msra.mxu0 %v593
  %735 = vmatpush.msra.mxu0 %v590
  %736 = vmatpush.msra.mxu0 %v587
  %737 = vmatpush.msra.mxu0 %v584
  %738 = vmatpush.msra.mxu0 %v581
  %739 = vmatpush.msra.mxu0 %v578
  %740 = vmatpush.msra.mxu0 %v575
  %741 = vmatmul.f32.gmra.mxu0 %v620
  %v742 = vpop.f32.mrf.mxu0
  %v743 = vadd.f32 %v614, %v742
  %744 = vmatmul.f32.gmra.mxu0 %v623
  %v745 = vpop.f32.mrf.mxu0
  %v746 = vadd.f32 %v614, %v745
  %747 = vmatmul.f32.gmra.mxu0 %v626
  %v748 = vpop.f32.mrf.mxu0
  %v749 = vadd.f32 %v614, %v748
  %750 = vmatmul.f32.gmra.mxu0 %v629
  %v751 = vpop.f32.mrf.mxu0
  %v752 = vadd.f32 %v614, %v751
  %753 = vmatmul.f32.gmra.mxu0 %v632
  %v754 = vpop.f32.mrf.mxu0
  %v755 = vadd.f32 %v614, %v754
  %756 = vmatmul.f32.gmra.mxu0 %v635
  %v757 = vpop.f32.mrf.mxu0
  %v758 = vadd.f32 %v614, %v757
  %759 = vmatmul.f32.gmra.mxu0 %v638
  %v760 = vpop.f32.mrf.mxu0
  %v761 = vadd.f32 %v614, %v760
  %762 = vmatmul.f32.gmra.mxu0 %v641
  %v763 = vpop.f32.mrf.mxu0
  %v764 = vadd.f32 %v614, %v763
  %765 = vdwg.mxu0
  %v766 = vmax.f32 %v661, 0.0
  %v767 = vmax.f32 %v702, 0.0
  %v768 = vmax.f32 %v743, 0.0
  %v769 = vmax.f32 %v664, 0.0
  %v770 = vmax.f32 %v705, 0.0
  %v771 = vmax.f32 %v746, 0.0
  %v772 = vmax.f32 %v667, 0.0
  %v773 = vmax.f32 %v708, 0.0
  %v774 = vmax.f32 %v749, 0.0
  %v775 = vmax.f32 %v670, 0.0
  %v776 = vmax.f32 %v711, 0.0
  %v777 = vmax.f32 %v752, 0.0
  %v778 = vmax.f32 %v673, 0.0
  %v779 = vmax.f32 %v714, 0.0
  %v780 = vmax.f32 %v755, 0.0
  %v781 = vmax.f32 %v676, 0.0
  %v782 = vmax.f32 %v717, 0.0
  %v783 = vmax.f32 %v758, 0.0
  %v784 = vmax.f32 %v679, 0.0
  %v785 = vmax.f32 %v720, 0.0
  %v786 = vmax.f32 %v761, 0.0
  %v787 = vmax.f32 %v682, 0.0
  %v788 = vmax.f32 %v723, 0.0
  %v789 = vmax.f32 %v764, 0.0
  %790 = vst [vmem:[%s3] sm:$0xff] %v766
  %791 = vst [vmem:[%s3 + $0x8] sm:$0xff] %v767
  %792 = vst [vmem:[%s3 + $0x10] sm:$0xff] %v768
  %793 = vst [vmem:[%s3 + $0x18] sm:$0xff] %v769
  %794 = vst [vmem:[%s3 + $0x20] sm:$0xff] %v770
  %795 = vst [vmem:[%s3 + $0x28] sm:$0xff] %v771
  %796 = vst [vmem:[%s3 + $0x30] sm:$0xff] %v772
  %797 = vst [vmem:[%s3 + $0x38] sm:$0xff] %v773
  %798 = vst [vmem:[%s3 + $0x40] sm:$0xff] %v774
  %799 = vst [vmem:[%s3 + $0x48] sm:$0xff] %v775
  %800 = vst [vmem:[%s3 + $0x50] sm:$0xff] %v776
  %801 = vst [vmem:[%s3 + $0x58] sm:$0xff] %v777
  %802 = vst [vmem:[%s3 + $0x60] sm:$0xff] %v778
  %803 = vst [vmem:[%s3 + $0x68] sm:$0xff] %v779
  %804 = vst [vmem:[%s3 + $0x70] sm:$0xff] %v780
  %805 = vst [vmem:[%s3 + $0x78] sm:$0xff] %v781
  %806 = vst [vmem:[%s3 + $0x80] sm:$0xff] %v782
  %807 = vst [vmem:[%s3 + $0x88] sm:$0xff] %v783
  %808 = vst [vmem:[%s3 + $0x90] sm:$0xff] %v784
  %809 = vst [vmem:[%s3 + $0x98] sm:$0xff] %v785
  %810 = vst [vmem:[%s3 + $0xa0] sm:$0xff] %v786
  %811 = vst [vmem:[%s3 + $0xa8] sm:$0xff] %v787
  %812 = vst [vmem:[%s3 + $0xb0] sm:$0xff] %v788
  %813 = vst [vmem:[%s3 + $0xb8] sm:$0xff] %v789
  // Predicated region
  $region14: #{bert_lstm_cnn_forward.1} parent=0 // pred_check
    _
  $region15: #{bert_lstm_cnn_forward.1} parent=0 // pred_check_branch
    %815 = sbr.rel (0) target = $region17
  $region16: #{bert_lstm_cnn_forward.1} parent=0 // pred_region
    _
  $region17: #{bert_lstm_cnn_forward.1} parent=0 // pred_fallthru
    _
  // Predicated region
  $region18: #{bert_lstm_cnn_forward.1} parent=0 // pred_check
    _
  $region19: #{bert_lstm_cnn_forward.1} parent=0 // pred_check_branch
    %817 = sbr.rel (0) target = $region21
  $region20: #{bert_lstm_cnn_forward.1} parent=0 // pred_region
    _
  $region21: #{bert_lstm_cnn_forward.1} parent=0 // pred_fallthru
    _

</llo_original>
